<compile_context>
chip_gen: v5e
topology: v5e:2x2
jax: 0.10.0
libtpu: 0.0.40
codegen_flags: <defaults>
</compile_context>

<pallas_src>
import jax
import jax.numpy as jnp
import numpy as np
from jax import lax
from jax.experimental import pallas as pl
from jax.experimental.pallas import tpu as pltpu

EPS = 1e-5
VMEM_LIMIT_BYTES = 48 * 1024 * 1024
IM2COL_MAX_CIN = 128   # below: one K=9*Cin im2col matmul; at/above: 9 acc-dots


# --------------------------------- kernels --------------------------------- #

def bn_relu_conv1x1_nchw_in_kernel(x_ref, sc_ref, sh_ref, w_ref, cb_ref,
                                   o_ref, sum_ref, sq_ref):
    # x: (Cin, TM) f32 NCHW tile; sc/sh: (1, Cin) folded conditional BN;
    # w: (Cin, Co) bf16; cb: (1, Co); o: (TM, Co) bf16 (NHWC intermediate);
    # sum/sq: (1, Co) f32, accumulated over the HW-tile grid axis.
    xt = jnp.transpose(x_ref[...], (1, 0))                       # (TM, Cin) f32
    a = jnp.maximum(xt * sc_ref[...] + sh_ref[...], 0.0)
    out = jnp.dot(a.astype(w_ref.dtype), w_ref[...],
                  preferred_element_type=jnp.float32) + cb_ref[...]

    @pl.when(pl.program_id(1) == 0)
    def _init():
        sum_ref[...] = jnp.zeros_like(sum_ref)
        sq_ref[...] = jnp.zeros_like(sq_ref)

    sum_ref[...] += jnp.sum(out, axis=0, keepdims=True)
    sq_ref[...] += jnp.sum(out * out, axis=0, keepdims=True)
    o_ref[...] = out.astype(o_ref.dtype)


def bn_relu_conv3x3_kernel(x_ref, sc_ref, sh_ref, w_ref, cb_ref,
                           o_ref, sum_ref, sq_ref, xp_ref):
    # x: (H, W, Cin) bf16; sc/sh: (1, Cin) f32; w: (9*Cin, Co) bf16;
    # cb: (1, Co); o: (H*W, Co) bf16; sum/sq: (1, Co) f32.
    # SAME zero-padding is assembled in a VMEM scratch (row-offset stores only).
    H, W, Cin = x_ref.shape
    Co = o_ref.shape[-1]

    a = jnp.maximum(x_ref[...].astype(jnp.float32) * sc_ref[...] + sh_ref[...],
                    0.0)                                          # (H, W, Cin) f32

    zcol = jnp.zeros((H, 1, Cin), jnp.float32)
    zrow = jnp.zeros((1, W + 2, Cin), jnp.float32)
    xp_ref[0:1, :, :] = zrow
    xp_ref[H + 1:H + 2, :, :] = zrow
    xp_ref[1:H + 1, :, :] = jnp.concatenate([zcol, a, zcol], axis=1)
    xp = xp_ref[...]                                              # (H+2, W+2, Cin) f32

    if Cin < IM2COL_MAX_CIN:
        # Small Cin: single im2col matmul, K = 9*Cin (one MXU push).  The 9x
        # column/patch blobs are bf16 (halves VMEM + copy traffic).
        cols = [xp[ky:ky + H, kx:kx + W, :].astype(jnp.bfloat16)
                for ky in range(3) for kx in range(3)]
        patches = jnp.concatenate(cols, axis=-1).reshape(H * W, 9 * Cin)
        out = jnp.dot(patches, w_ref[...], preferred_element_type=jnp.float32)
    else:
        # Large Cin: no patches blob at all -- accumulate 9 shifted K=Cin
        # matmuls into an f32 accumulator (MXU already well fed at K>=128).
        out = jnp.zeros((H * W, Co), jnp.float32)
        for k in range(9):
            ky, kx = divmod(k, 3)
            win = xp[ky:ky + H, kx:kx + W, :].reshape(H * W, Cin)
            out = out + jnp.dot(win.astype(jnp.bfloat16),
                                w_ref[k * Cin:(k + 1) * Cin, :],
                                preferred_element_type=jnp.float32)

    out = out + cb_ref[...]
    sum_ref[...] = jnp.sum(out, axis=0, keepdims=True)
    sq_ref[...] = jnp.sum(out * out, axis=0, keepdims=True)
    o_ref[...] = out.astype(o_ref.dtype)


def bn_relu_conv1x1_residual_nchw_out_kernel(h_ref, sc_ref, sh_ref, w_ref,
                                             cb_ref, skip_ref, o_ref):
    # h: (TM, Ch) bf16 NHWC tile; skip: (Cout, TM) f32 NCHW tile (first Cout
    # channels of x); o: (Cout, TM) f32 NCHW tile.
    a = jnp.maximum(h_ref[...].astype(jnp.float32) * sc_ref[...] + sh_ref[...],
                    0.0)
    out = jnp.dot(a.astype(w_ref.dtype), w_ref[...],
                  preferred_element_type=jnp.float32) + cb_ref[...]  # (TM, Cout)
    o_ref[...] = jnp.transpose(out, (1, 0)) + skip_ref[...]          # (Cout, TM)


# --------------------------- pallas_call wrappers --------------------------- #

def _pick_tile(m, bytes_per_row, budget=24 * 1024 * 1024):
    """Largest HW tile (multiple of 128) dividing m that fits the VMEM budget."""
    for c in (2048, 1024, 512, 256, 128):
        if m % c == 0 and c * bytes_per_row <= budget:
            return c
    return m   # full extent is always layout-legal


def pallas_bn_relu_conv1x1_nchw_in(x3, scale, shift, w, cb):
    # x3: (N, Cin, M) f32 NCHW; scale/shift: (N, 1, Cin); w: (Cin, Co) bf16.
    N, Cin, M = x3.shape
    Co = w.shape[1]
    TM = _pick_tile(M, 4 * (3 * Cin + 2 * Co))
    grid = (N, M // TM)

    return pl.pallas_call(
        bn_relu_conv1x1_nchw_in_kernel,
        grid=grid,
        in_specs=[
            pl.BlockSpec((None, Cin, TM), lambda n, m: (n, 0, m)),
            pl.BlockSpec((None, 1, Cin), lambda n, m: (n, 0, 0)),
            pl.BlockSpec((None, 1, Cin), lambda n, m: (n, 0, 0)),
            pl.BlockSpec(w.shape, lambda n, m: (0, 0)),
            pl.BlockSpec(cb.shape, lambda n, m: (0, 0)),
        ],
        out_specs=(
            pl.BlockSpec((None, TM, Co), lambda n, m: (n, m, 0)),
            pl.BlockSpec((None, 1, Co), lambda n, m: (n, 0, 0)),
            pl.BlockSpec((None, 1, Co), lambda n, m: (n, 0, 0)),
        ),
        out_shape=(
            jax.ShapeDtypeStruct((N, M, Co), jnp.bfloat16),
            jax.ShapeDtypeStruct((N, 1, Co), jnp.float32),
            jax.ShapeDtypeStruct((N, 1, Co), jnp.float32),
        ),
        compiler_params=pltpu.CompilerParams(
            dimension_semantics=("parallel", "arbitrary"),   # stats accumulate over m
            vmem_limit_bytes=VMEM_LIMIT_BYTES),
    )(x3, scale, shift, w, cb)


def pallas_bn_relu_conv3x3(x4, scale, shift, w, cb):
    # x4: (N, H, W, Cin) bf16; scale/shift: (N, 1, Cin) f32; w: (9*Cin, Co) bf16.
    N, H, W, Cin = x4.shape
    Co = w.shape[1]
    return pl.pallas_call(
        bn_relu_conv3x3_kernel,
        grid=(N,),
        in_specs=[
            pl.BlockSpec((None, H, W, Cin), lambda n: (n, 0, 0, 0)),
            pl.BlockSpec((None, 1, Cin), lambda n: (n, 0, 0)),
            pl.BlockSpec((None, 1, Cin), lambda n: (n, 0, 0)),
            pl.BlockSpec(w.shape, lambda n: (0, 0)),
            pl.BlockSpec(cb.shape, lambda n: (0, 0)),
        ],
        out_specs=(
            pl.BlockSpec((None, H * W, Co), lambda n: (n, 0, 0)),
            pl.BlockSpec((None, 1, Co), lambda n: (n, 0, 0)),
            pl.BlockSpec((None, 1, Co), lambda n: (n, 0, 0)),
        ),
        out_shape=(
            jax.ShapeDtypeStruct((N, H * W, Co), jnp.bfloat16),
            jax.ShapeDtypeStruct((N, 1, Co), jnp.float32),
            jax.ShapeDtypeStruct((N, 1, Co), jnp.float32),
        ),
        scratch_shapes=[pltpu.VMEM((H + 2, W + 2, Cin), jnp.float32)],
        compiler_params=pltpu.CompilerParams(
            dimension_semantics=("parallel",),
            vmem_limit_bytes=VMEM_LIMIT_BYTES),
    )(x4, scale, shift, w, cb)


def pallas_bn_relu_conv1x1_residual(h3, scale, shift, w, cb, x3, cout):
    # h3: (N, M, Ch) bf16; x3: (N, Cin, M) f32 (skip reads first cout channels);
    # output: (N, Cout, M) f32 NCHW.
    N, M, Ch = h3.shape
    TM = _pick_tile(M, 2 * Ch + 4 * 2 * cout)
    grid = (N, M // TM)

    return pl.pallas_call(
        bn_relu_conv1x1_residual_nchw_out_kernel,
        grid=grid,
        in_specs=[
            pl.BlockSpec((None, TM, Ch), lambda n, m: (n, m, 0)),
            pl.BlockSpec((None, 1, Ch), lambda n, m: (n, 0, 0)),
            pl.BlockSpec((None, 1, Ch), lambda n, m: (n, 0, 0)),
            pl.BlockSpec(w.shape, lambda n, m: (0, 0)),
            pl.BlockSpec(cb.shape, lambda n, m: (0, 0)),
            pl.BlockSpec((None, cout, TM), lambda n, m: (n, 0, m)),
        ],
        out_specs=pl.BlockSpec((None, cout, TM), lambda n, m: (n, 0, m)),
        out_shape=jax.ShapeDtypeStruct((N, cout, M), jnp.float32),
        compiler_params=pltpu.CompilerParams(
            dimension_semantics=("parallel", "parallel"),
            vmem_limit_bytes=VMEM_LIMIT_BYTES),
    )(h3, scale, shift, w, cb, x3)


# ------------------------------ GBlock forward ------------------------------ #

def _fold_cbn(mean, var, y, gain_w, bias_w):
    # Fold class-conditional BN (batch stats + linear gain/bias from y) into a
    # per-(sample, channel) affine: h_hat = h * scale + shift.
    gain = 1.0 + y @ gain_w.T                      # (N, C)
    bias = y @ bias_w.T                            # (N, C)
    inv = gain * lax.rsqrt(var + EPS)              # (N, C)
    scale = inv
    shift = bias - mean[None, :] * inv
    return (scale[:, None, :].astype(jnp.float32),
            shift[:, None, :].astype(jnp.float32))


def _fold_cbn_from_sums(hsum, hsq, count, y, gain_w, bias_w):
    # Combine the per-sample partial sums emitted by the producer kernel.
    s = jnp.sum(hsum, axis=(0, 1))
    ss = jnp.sum(hsq, axis=(0, 1))
    mean = s / count
    var = jnp.maximum(ss / count - mean * mean, 0.0)
    return _fold_cbn(mean, var, y, gain_w, bias_w)


def gblock_forward(p, x_nchw, y):
    """GBlock.forward(x, y). x_nchw: (N, Cin, H, W) f32, y: (N, S). Returns NCHW."""
    N, Cin, H, W = x_nchw.shape
    Ch = p['w1'].shape[1]
    Cout = p['w4'].shape[1]
    assert Cout <= Cin, "BigGAN-deep channel-drop shortcut requires Cout <= Cin"
    M = H * W

    x3 = x_nchw.reshape(N, Cin, M).astype(jnp.float32)   # NCHW, contiguous reshape

    # Weights: bf16 matmul operands; f32 accumulation inside the kernels.
    w1 = p['w1'].astype(jnp.bfloat16)                     # (Cin, Ch)
    w2 = p['w2'].reshape(9 * Ch, Ch).astype(jnp.bfloat16)  # im2col tap-major layout
    w3 = p['w3'].reshape(9 * Ch, Ch).astype(jnp.bfloat16)
    w4 = p['w4'].astype(jnp.bfloat16)                     # (Ch, Cout)

    # bn1 statistics from x (the only extra pass; later stages get their stats
    # fused into the producer kernels).
    mean1 = jnp.mean(x3, axis=(0, 2))
    var1 = jnp.mean(jnp.square(x3 - mean1[None, :, None]), axis=(0, 2))
    s1, t1 = _fold_cbn(mean1, var1, y, p['bn1_g'], p['bn1_b'])

    # K1: h1 = conv1(act(bn1(x, y)))  (+ fused stats for bn2)
    h1, sum1, sq1 = pallas_bn_relu_conv1x1_nchw_in(x3, s1, t1, w1, p['b1'][None])
    s2, t2 = _fold_cbn_from_sums(sum1, sq1, N * M, y, p['bn2_g'], p['bn2_b'])

    # K2: h2 = conv2(act(bn2(h1, y)))  (pad + conv fused; + stats for bn3)
    h2, sum2, sq2 = pallas_bn_relu_conv3x3(h1.reshape(N, H, W, Ch),
                                           s2, t2, w2, p['b2'][None])
    s3, t3 = _fold_cbn_from_sums(sum2, sq2, N * M, y, p['bn3_g'], p['bn3_b'])

    # K3: h3 = conv3(act(bn3(h2, y)))  (+ stats for bn4)
    h3, sum3, sq3 = pallas_bn_relu_conv3x3(h2.reshape(N, H, W, Ch),
                                           s3, t3, w3, p['b3'][None])
    s4, t4 = _fold_cbn_from_sums(sum3, sq3, N * M, y, p['bn4_g'], p['bn4_b'])

    # K4: out = conv4(act(bn4(h3, y))) + x[:, :Cout]   (residual read/written NCHW)
    out3 = pallas_bn_relu_conv1x1_residual(h3, s4, t4, w4, p['b4'][None],
                                           x3, Cout)
    return out3.reshape(N, Cout, H, W)


# --------------------------- pure-JAX reference ----------------------------- #

def reference_forward(p, x_nchw, y):
    def bn(x, gw, bw):
        mean = jnp.mean(x, axis=(0, 2, 3), keepdims=True)
        var = jnp.mean((x - mean) ** 2, axis=(0, 2, 3), keepdims=True)
        xhat = (x - mean) / jnp.sqrt(var + EPS)
        g = 1.0 + y @ gw.T
        b = y @ bw.T
        return xhat * g[:, :, None, None] + b[:, :, None, None]

    relu = lambda t: jnp.maximum(t, 0.0)

    def conv1x1(x, w, b):
        return jnp.einsum('nchw,co->nohw', x, w) + b[None, :, None, None]

    def conv3x3(x, w, b):
        wk = w.reshape(3, 3, w.shape[1], w.shape[2])   # HWIO, tap order ky*3+kx
        out = lax.conv_general_dilated(
            x, wk, (1, 1), 'SAME',
            dimension_numbers=('NCHW', 'HWIO', 'NCHW'))
        return out + b[None, :, None, None]

    Cout = p['w4'].shape[1]
    h = conv1x1(relu(bn(x_nchw, p['bn1_g'], p['bn1_b'])), p['w1'], p['b1'])
    h = conv3x3(relu(bn(h, p['bn2_g'], p['bn2_b'])), p['w2'], p['b2'])
    h = conv3x3(relu(bn(h, p['bn3_g'], p['bn3_b'])), p['w3'], p['b3'])
    h = conv1x1(relu(bn(h, p['bn4_g'], p['bn4_b'])), p['w4'], p['b4'])
    return h + x_nchw[:, :Cout]


# ---------------------------------- main ------------------------------------ #

if __name__ == "__main__":
    key = jax.random.PRNGKey(0)
    N, Cin, Cout, H, W, S = 2, 16, 8, 8, 8, 8
    Ch = Cin // 4                                     # channel_ratio = 4

    keys = jax.random.split(key, 18)
    rn = lambda k, shape, s=0.1: s * jax.random.normal(k, shape, jnp.float32)

    params = dict(
        w1=rn(keys[0], (Cin, Ch)), b1=rn(keys[1], (Ch,)),
        w2=rn(keys[2], (9, Ch, Ch)), b2=rn(keys[3], (Ch,)),
        w3=rn(keys[4], (9, Ch, Ch)), b3=rn(keys[5], (Ch,)),
        w4=rn(keys[6], (Ch, Cout)), b4=rn(keys[7], (Cout,)),
        bn1_g=rn(keys[8], (Cin, S)), bn1_b=rn(keys[9], (Cin, S)),
        bn2_g=rn(keys[10], (Ch, S)), bn2_b=rn(keys[11], (Ch, S)),
        bn3_g=rn(keys[12], (Ch, S)), bn3_b=rn(keys[13], (Ch, S)),
        bn4_g=rn(keys[14], (Ch, S)), bn4_b=rn(keys[15], (Ch, S)),
    )

    x = jax.random.normal(keys[16], (N, Cin, H, W), jnp.float32)
    y = jax.random.normal(keys[17], (N, S), jnp.float32)

    out = jax.block_until_ready(gblock_forward(params, x, y))
    assert out.shape == (N, Cout, H, W)

    ref = jax.block_until_ready(reference_forward(params, x, y))
    # Tolerance accounts for bf16 matmul operands + bf16 inter-stage storage
    # (f32 accumulation / stats everywhere); structural errors would be >> 4e-2.
    np.testing.assert_allclose(np.asarray(out), np.asarray(ref),
                               rtol=4e-2, atol=4e-2)
    print("KERNEL_OK")
</pallas_src>

<mosaic_0001>
module attributes {stable_mosaic.version = 11 : i64} {
  func.func @bn_relu_conv1x1_nchw_in_kernel(%arg0: i32, %arg1: i32, %arg2: memref<1x16x64xf32, #tpu.memory_space<vmem>>, %arg3: memref<1x1x16xf32, #tpu.memory_space<vmem>>, %arg4: memref<1x1x16xf32, #tpu.memory_space<vmem>>, %arg5: memref<16x4xbf16, #tpu.memory_space<vmem>>, %arg6: memref<1x4xf32, #tpu.memory_space<vmem>>, %arg7: memref<1x64x4xbf16, #tpu.memory_space<vmem>>, %arg8: memref<1x1x4xf32, #tpu.memory_space<vmem>>, %arg9: memref<1x1x4xf32, #tpu.memory_space<vmem>>) attributes {dimension_semantics = [#tpu.dimension_semantics<parallel>, #tpu.dimension_semantics<arbitrary>], iteration_bounds = array<i64: 2, 1>, scalar_prefetch = 0 : i64, scratch_operands = 0 : i64, tpu.core_type = #tpu.core_type<tc>, window_params = [{transform_indices = @transform_0, window_bounds = array<i64: 1, 16, 64>}, {transform_indices = @transform_1, window_bounds = array<i64: 1, 1, 16>}, {transform_indices = @transform_2, window_bounds = array<i64: 1, 1, 16>}, {pipeline_mode = #tpu.pipeline_mode<synchronous>, transform_indices = @transform_3, window_bounds = array<i64: 16, 4>}, {pipeline_mode = #tpu.pipeline_mode<synchronous>, transform_indices = @transform_4, window_bounds = array<i64: 1, 4>}, {transform_indices = @transform_5, window_bounds = array<i64: 1, 64, 4>}, {transform_indices = @transform_6, window_bounds = array<i64: 1, 1, 4>}, {transform_indices = @transform_7, window_bounds = array<i64: 1, 1, 4>}]} {
    %c0 = arith.constant 0 : index
    %c0_0 = arith.constant 0 : index
    %c0_1 = arith.constant 0 : index
    %0 = vector.load %arg2[%c0, %c0_0, %c0_1] : memref<1x16x64xf32, #tpu.memory_space<vmem>>, vector<1x16x64xf32>
    %1 = vector.shape_cast %0 : vector<1x16x64xf32> to vector<16x64xf32>
    %2 = tpu.transpose %1, [1, 0] : vector<16x64xf32> -> vector<64x16xf32>
    %c0_2 = arith.constant 0 : index
    %c0_3 = arith.constant 0 : index
    %c0_4 = arith.constant 0 : index
    %3 = vector.load %arg3[%c0_2, %c0_3, %c0_4] : memref<1x1x16xf32, #tpu.memory_space<vmem>>, vector<1x1x16xf32>
    %4 = vector.shape_cast %3 : vector<1x1x16xf32> to vector<1x16xf32>
    %5 = vector.broadcast %4 : vector<1x16xf32> to vector<64x16xf32>
    %6 = arith.mulf %2, %5 : vector<64x16xf32>
    %c0_5 = arith.constant 0 : index
    %c0_6 = arith.constant 0 : index
    %c0_7 = arith.constant 0 : index
    %7 = vector.load %arg4[%c0_5, %c0_6, %c0_7] : memref<1x1x16xf32, #tpu.memory_space<vmem>>, vector<1x1x16xf32>
    %8 = vector.shape_cast %7 : vector<1x1x16xf32> to vector<1x16xf32>
    %9 = vector.broadcast %8 : vector<1x16xf32> to vector<64x16xf32>
    %10 = arith.addf %6, %9 : vector<64x16xf32>
    %cst = arith.constant 0.000000e+00 : f32
    %11 = vector.broadcast %cst : f32 to vector<64x16xf32>
    %12 = arith.maximumf %10, %11 : vector<64x16xf32>
    %13 = arith.truncf %12 : vector<64x16xf32> to vector<64x16xbf16>
    %c0_8 = arith.constant 0 : index
    %c0_9 = arith.constant 0 : index
    %14 = vector.load %arg5[%c0_8, %c0_9] : memref<16x4xbf16, #tpu.memory_space<vmem>>, vector<16x4xbf16>
    %cst_10 = arith.constant dense<0.000000e+00> : vector<64x4xf32>
    %15 = tpu.matmul %13, %14, %cst_10 {dimension_numbers = #tpu.dot_dimension_numbers<[1], [0], [0], [1], [0, 0, 1, 1], [], []>} : vector<64x16xbf16>, vector<16x4xbf16>, vector<64x4xf32> -> vector<64x4xf32>
    %c0_11 = arith.constant 0 : index
    %c0_12 = arith.constant 0 : index
    %16 = vector.load %arg6[%c0_11, %c0_12] : memref<1x4xf32, #tpu.memory_space<vmem>>, vector<1x4xf32>
    %17 = vector.broadcast %16 : vector<1x4xf32> to vector<64x4xf32>
    %18 = arith.addf %15, %17 : vector<64x4xf32>
    %c0_i32 = arith.constant 0 : i32
    %19 = arith.cmpi eq, %arg1, %c0_i32 : i32
    %20 = arith.extui %19 : i1 to i32
    %c0_i32_13 = arith.constant 0 : i32
    %21 = arith.cmpi ne, %20, %c0_i32_13 : i32
    scf.if %21 {
      %cst_31 = arith.constant 0.000000e+00 : f32
      %43 = vector.broadcast %cst_31 : f32 to vector<1x4xf32>
      %c0_32 = arith.constant 0 : index
      %c0_33 = arith.constant 0 : index
      %c0_34 = arith.constant 0 : index
      %44 = vector.load %arg8[%c0_32, %c0_33, %c0_34] : memref<1x1x4xf32, #tpu.memory_space<vmem>>, vector<1x1x4xf32>
      %45 = vector.shape_cast %44 : vector<1x1x4xf32> to vector<1x4xf32>
      %46 = vector.shape_cast %43 : vector<1x4xf32> to vector<1x1x4xf32>
      tpu.vector_store %arg8[%c0_32, %c0_33, %c0_34], %46 {strides = array<i32>} : memref<1x1x4xf32, #tpu.memory_space<vmem>>, vector<1x1x4xf32>,
      %cst_35 = arith.constant 0.000000e+00 : f32
      %47 = vector.broadcast %cst_35 : f32 to vector<1x4xf32>
      %c0_36 = arith.constant 0 : index
      %c0_37 = arith.constant 0 : index
      %c0_38 = arith.constant 0 : index
      %48 = vector.load %arg9[%c0_36, %c0_37, %c0_38] : memref<1x1x4xf32, #tpu.memory_space<vmem>>, vector<1x1x4xf32>
      %49 = vector.shape_cast %48 : vector<1x1x4xf32> to vector<1x4xf32>
      %50 = vector.shape_cast %47 : vector<1x4xf32> to vector<1x1x4xf32>
      tpu.vector_store %arg9[%c0_36, %c0_37, %c0_38], %50 {strides = array<i32>} : memref<1x1x4xf32, #tpu.memory_space<vmem>>, vector<1x1x4xf32>,
    } else {
    }
    %c0_14 = arith.constant 0 : index
    %c0_15 = arith.constant 0 : index
    %c0_16 = arith.constant 0 : index
    %22 = vector.load %arg8[%c0_14, %c0_15, %c0_16] : memref<1x1x4xf32, #tpu.memory_space<vmem>>, vector<1x1x4xf32>
    %23 = vector.shape_cast %22 : vector<1x1x4xf32> to vector<1x4xf32>
    %cst_17 = arith.constant dense<0.000000e+00> : vector<4xf32>
    %24 = vector.multi_reduction <add>, %18, %cst_17 [0] : vector<64x4xf32> to vector<4xf32>
    %25 = vector.shape_cast %24 : vector<4xf32> to vector<1x4xf32>
    %26 = arith.addf %23, %25 : vector<1x4xf32>
    %c0_18 = arith.constant 0 : index
    %c0_19 = arith.constant 0 : index
    %c0_20 = arith.constant 0 : index
    %27 = vector.load %arg8[%c0_18, %c0_19, %c0_20] : memref<1x1x4xf32, #tpu.memory_space<vmem>>, vector<1x1x4xf32>
    %28 = vector.shape_cast %27 : vector<1x1x4xf32> to vector<1x4xf32>
    %29 = vector.shape_cast %26 : vector<1x4xf32> to vector<1x1x4xf32>
    tpu.vector_store %arg8[%c0_18, %c0_19, %c0_20], %29 {strides = array<i32>} : memref<1x1x4xf32, #tpu.memory_space<vmem>>, vector<1x1x4xf32>,
    %c0_21 = arith.constant 0 : index
    %c0_22 = arith.constant 0 : index
    %c0_23 = arith.constant 0 : index
    %30 = vector.load %arg9[%c0_21, %c0_22, %c0_23] : memref<1x1x4xf32, #tpu.memory_space<vmem>>, vector<1x1x4xf32>
    %31 = vector.shape_cast %30 : vector<1x1x4xf32> to vector<1x4xf32>
    %32 = arith.mulf %18, %18 : vector<64x4xf32>
    %cst_24 = arith.constant dense<0.000000e+00> : vector<4xf32>
    %33 = vector.multi_reduction <add>, %32, %cst_24 [0] : vector<64x4xf32> to vector<4xf32>
    %34 = vector.shape_cast %33 : vector<4xf32> to vector<1x4xf32>
    %35 = arith.addf %31, %34 : vector<1x4xf32>
    %c0_25 = arith.constant 0 : index
    %c0_26 = arith.constant 0 : index
    %c0_27 = arith.constant 0 : index
    %36 = vector.load %arg9[%c0_25, %c0_26, %c0_27] : memref<1x1x4xf32, #tpu.memory_space<vmem>>, vector<1x1x4xf32>
    %37 = vector.shape_cast %36 : vector<1x1x4xf32> to vector<1x4xf32>
    %38 = vector.shape_cast %35 : vector<1x4xf32> to vector<1x1x4xf32>
    tpu.vector_store %arg9[%c0_25, %c0_26, %c0_27], %38 {strides = array<i32>} : memref<1x1x4xf32, #tpu.memory_space<vmem>>, vector<1x1x4xf32>,
    %39 = arith.truncf %18 : vector<64x4xf32> to vector<64x4xbf16>
    %c0_28 = arith.constant 0 : index
    %c0_29 = arith.constant 0 : index
    %c0_30 = arith.constant 0 : index
    %40 = vector.load %arg7[%c0_28, %c0_29, %c0_30] : memref<1x64x4xbf16, #tpu.memory_space<vmem>>, vector<1x64x4xbf16>
    %41 = vector.shape_cast %40 : vector<1x64x4xbf16> to vector<64x4xbf16>
    %42 = vector.shape_cast %39 : vector<64x4xbf16> to vector<1x64x4xbf16>
    tpu.vector_store %arg7[%c0_28, %c0_29, %c0_30], %42 {strides = array<i32>} : memref<1x64x4xbf16, #tpu.memory_space<vmem>>, vector<1x64x4xbf16>,
    return
  }
  func.func @transform_0(%arg0: i32, %arg1: i32) -> (i32, i32, i32) {
    %c0_i32 = arith.constant 0 : i32
    %c0_i32_0 = arith.constant 0 : i32
    return %arg0, %c0_i32, %arg1 : i32, i32, i32
  }
  func.func @transform_1(%arg0: i32, %arg1: i32) -> (i32, i32, i32) {
    %c0_i32 = arith.constant 0 : i32
    %c0_i32_0 = arith.constant 0 : i32
    %c0_i32_1 = arith.constant 0 : i32
    return %arg0, %c0_i32, %c0_i32_0 : i32, i32, i32
  }
  func.func @transform_2(%arg0: i32, %arg1: i32) -> (i32, i32, i32) {
    %c0_i32 = arith.constant 0 : i32
    %c0_i32_0 = arith.constant 0 : i32
    %c0_i32_1 = arith.constant 0 : i32
    return %arg0, %c0_i32, %c0_i32_0 : i32, i32, i32
  }
  func.func @transform_3(%arg0: i32, %arg1: i32) -> (i32, i32) {
    %c0_i32 = arith.constant 0 : i32
    %c0_i32_0 = arith.constant 0 : i32
    %c0_i32_1 = arith.constant 0 : i32
    return %c0_i32, %c0_i32_0 : i32, i32
  }
  func.func @transform_4(%arg0: i32, %arg1: i32) -> (i32, i32) {
    %c0_i32 = arith.constant 0 : i32
    %c0_i32_0 = arith.constant 0 : i32
    %c0_i32_1 = arith.constant 0 : i32
    return %c0_i32, %c0_i32_0 : i32, i32
  }
  func.func @transform_5(%arg0: i32, %arg1: i32) -> (i32, i32, i32) {
    %c0_i32 = arith.constant 0 : i32
    %c0_i32_0 = arith.constant 0 : i32
    return %arg0, %arg1, %c0_i32 : i32, i32, i32
  }
  func.func @transform_6(%arg0: i32, %arg1: i32) -> (i32, i32, i32) {
    %c0_i32 = arith.constant 0 : i32
    %c0_i32_0 = arith.constant 0 : i32
    %c0_i32_1 = arith.constant 0 : i32
    return %arg0, %c0_i32, %c0_i32_0 : i32, i32, i32
  }
  func.func @transform_7(%arg0: i32, %arg1: i32) -> (i32, i32, i32) {
    %c0_i32 = arith.constant 0 : i32
    %c0_i32_0 = arith.constant 0 : i32
    %c0_i32_1 = arith.constant 0 : i32
    return %arg0, %c0_i32, %c0_i32_0 : i32, i32, i32
  }
}

</mosaic_0001>

<llo_original>
// kernel: tpu_custom_call.1
$region0: #{tpu_custom_call.1}
  #allocation0 [shape = 'u32[]', space=smem, size = 0x4, offset = 0x4, fixed_abs, tag = 'smem constant byte address 0x4 - core index']
  #allocation1 [shape = 'u32[72,128]{1,0:T(1,128)}', space=vmem, size = 0x9000, scoped, tag = 'internal scratch']
  %s0 = inlined_call_operand.hbm [shape: f32[2,16,64], index: 0, kind: input, shape index: {}]
  %s1 = inlined_call_operand.vmem [shape: f32[2,1,16], index: 1, kind: input, shape index: {}]
  %s2 = inlined_call_operand.vmem [shape: f32[2,1,16], index: 2, kind: input, shape index: {}]
  %s3 = inlined_call_operand.vmem [shape: bf16[16,4], index: 3, kind: input, shape index: {}]
  %s4 = inlined_call_operand.vmem [shape: f32[1,4], index: 4, kind: input, shape index: {}]
  %s5 = inlined_call_operand.vmem [shape: bf16[2,64,4], index: 5, kind: output, shape index: {0}]
  %s6 = inlined_call_operand.hbm [shape: f32[2,1,4], index: 6, kind: output, shape index: {1}]
  %s7 = inlined_call_operand.hbm [shape: f32[2,1,4], index: 7, kind: output, shape index: {2}]
  %8 = xla_tuple %s5, %s6, %s7
  %s9 = sld [smem:[#allocation0]]
  $region77: #{tpu_custom_call.1} parent=0
    _
  %s11 = ssub.s32 1, %s9
  %s12 = scalar_select 0, %s11, %s9
  $region1: #{tpu_custom_call.1} parent=0
    #allocation2 [shape = 'u8[16384]{0}', space=vmem, size = 0x4000, scoped, tag = 'input window, operand 0']
    #allocation3 [shape = 's32[2]{0}', space=sflag, size = 0x8, scoped, tag = 'scoped memory for tpu_custom_call.1']
    #allocation4 [shape = 's32[2]{0}', space=sflag, size = 0x8, scoped, tag = 'scoped memory for tpu_custom_call.1']
    #allocation5 [shape = 'u8[1024]{0}', space=vmem, size = 0x400, scoped, tag = 'output window, operand 1']
    #allocation6 [shape = 'u8[1024]{0}', space=vmem, size = 0x400, scoped, tag = 'output window, operand 2']
    #allocation7 [shape = 's32[2]{0}', space=sflag, size = 0x8, scoped, tag = 'scoped memory for tpu_custom_call.1']
    %13 = vsyncpa [#allocation3], 0
    %s14 = scalar_lea.sflag [#allocation3], 1
    %15 = vsyncpa %s14, 0
    %16 = vsyncpa [#allocation4], 0
    %s17 = scalar_lea.sflag [#allocation4], 1
    %18 = vsyncpa %s17, 0
    %19 = vsyncpa [#allocation7], 0
    %s20 = scalar_lea.sflag [#allocation7], 1
    %21 = vsyncpa %s20, 0
    loop: start=0, step=1, limit=4
    $region2: #{tpu_custom_call.1} parent=1 // loop_pre_header
      _
    $region3: #{tpu_custom_call.1} parent=1 // loop_header
      %s23 = sphi 0, %s27
      %p24 = scmp.ge.s32.totalorder %s23, 4
      %s30 = sphi 0, %s42
      %s31 = sphi 0, %s38
      %s32 = sphi 0, %s30
      %s33 = sphi 0, %s31
      %s34 = sphi 0, %s32
      %s35 = sphi 0, %s33
      %s47 = sphi 0, %s49
      %s50 = sphi 0, %s47
      %s51 = sphi 0, %s50
      %s67 = sphi 0, %s51
      %s73 = sphi 0, %s75
      %s76 = sphi 0, %s73
      %s77 = sphi 0, %s76
      %s93 = sphi 0, %s77
      %s99 = sphi 0, %s101
      %s102 = sphi 0, %s99
      %s103 = sphi 0, %s102
      %s119 = sphi 0, %s103
      %s123 = sphi 0, %s123
      %s125 = sphi 0, %s123
      %s126 = sphi 0, %s125
      %s140 = sphi 0, %s126
      %s144 = sphi 0, %s144
      %s146 = sphi 0, %s144
      %s147 = sphi 0, %s146
      %s161 = sphi 0, %s147
      %s169 = sphi 0, %s171
      %s172 = sphi 0, %s169
      %s173 = sphi 0, %s172
      %s189 = sphi 0, %s173
      %s195 = sphi 0, %s197
      %s198 = sphi 0, %s195
      %s199 = sphi 0, %s198
      %s215 = sphi 0, %s199
      %s221 = sphi 0, %s223
      %s224 = sphi 0, %s221
      %s225 = sphi 0, %s224
      %s241 = sphi 0, %s225
    $region4: #{tpu_custom_call.1} parent=1 // loop_header_branch
      %26 = sbr.rel (%p24) target = $region8
    $region5: #{tpu_custom_call.1} parent=1 // loop_body
      %s28 = ssub.s32 %s23, 1
      %s29 = ssub.s32 %s23, 2
      %s36 = sadd.s32 1, %s31
      %p37 = scmp.ge.s32.totalorder %s36, 1
      %s38 = scalar_select %p37, 0, %s36
      %s39 = sadd.s32 1, %s30
      %s40 = scalar_select %p37, %s39, %s30
      %p41 = scmp.ge.s32.totalorder %s40, 2
      %s42 = scalar_select %p41, 0, %s40
      %s43 = ssub.s32 %s30, %s42
      %s44 = ssub.s32 %s31, %s38
      %s45 = sor.u32 %s43, %s44
      %p46 = scmp.eq.s32.totalorder %s45, 0
      %s48 = sadd.s32 %s47, 1
      %s49 = scalar_select %p46, %s47, %s48
      %p52 = pneg %p46
      %p53 = scmp.eq.s32.totalorder %s23, 1
      %p54 = por %p52, %p53
      %p55 = scmp.ne.s32.totalorder %s47, %s50
      %p56 = scmp.eq.s32.totalorder %s23, 0
      %p57 = por %p55, %p56
      %p58 = scmp.ne.s32.totalorder %s47, %s50
      %p59 = scmp.eq.s32.totalorder %s28, 1
      %p60 = por %p58, %p59
      %p61 = scmp.ne.s32.totalorder %s50, %s51
      %p62 = scmp.eq.s32.totalorder %s28, 0
      %p63 = por %p61, %p62
      %p64 = scmp.ne.s32.totalorder %s50, %s51
      %p65 = scmp.eq.s32.totalorder %s29, 1
      %p66 = por %p64, %p65
      %p68 = scmp.ne.s32.totalorder %s51, %s67
      %p69 = scmp.eq.s32.totalorder %s29, 0
      %p70 = por %p68, %p69
      %s71 = ssub.s32 %s30, %s42
      %p72 = scmp.eq.s32.totalorder %s71, 0
      %s74 = sadd.s32 %s73, 1
      %s75 = scalar_select %p72, %s73, %s74
      %p78 = pneg %p72
      %p79 = scmp.eq.s32.totalorder %s23, 1
      %p80 = por %p78, %p79
      %p81 = scmp.ne.s32.totalorder %s73, %s76
      %p82 = scmp.eq.s32.totalorder %s23, 0
      %p83 = por %p81, %p82
      %p84 = scmp.ne.s32.totalorder %s73, %s76
      %p85 = scmp.eq.s32.totalorder %s28, 1
      %p86 = por %p84, %p85
      %p87 = scmp.ne.s32.totalorder %s76, %s77
      %p88 = scmp.eq.s32.totalorder %s28, 0
      %p89 = por %p87, %p88
      %p90 = scmp.ne.s32.totalorder %s76, %s77
      %p91 = scmp.eq.s32.totalorder %s29, 1
      %p92 = por %p90, %p91
      %p94 = scmp.ne.s32.totalorder %s77, %s93
      %p95 = scmp.eq.s32.totalorder %s29, 0
      %p96 = por %p94, %p95
      %s97 = ssub.s32 %s30, %s42
      %p98 = scmp.eq.s32.totalorder %s97, 0
      %s100 = sadd.s32 %s99, 1
      %s101 = scalar_select %p98, %s99, %s100
      %p104 = pneg %p98
      %p105 = scmp.eq.s32.totalorder %s23, 1
      %p106 = por %p104, %p105
      %p107 = scmp.ne.s32.totalorder %s99, %s102
      %p108 = scmp.eq.s32.totalorder %s23, 0
      %p109 = por %p107, %p108
      %p110 = scmp.ne.s32.totalorder %s99, %s102
      %p111 = scmp.eq.s32.totalorder %s28, 1
      %p112 = por %p110, %p111
      %p113 = scmp.ne.s32.totalorder %s102, %s103
      %p114 = scmp.eq.s32.totalorder %s28, 0
      %p115 = por %p113, %p114
      %p116 = scmp.ne.s32.totalorder %s102, %s103
      %p117 = scmp.eq.s32.totalorder %s29, 1
      %p118 = por %p116, %p117
      %p120 = scmp.ne.s32.totalorder %s103, %s119
      %p121 = scmp.eq.s32.totalorder %s29, 0
      %p122 = por %p120, %p121
      %s124 = sadd.s32 %s123, 1
      %p127 = scmp.eq.s32.totalorder %s23, 1
      %p128 = scmp.ne.s32.totalorder %s123, %s125
      %p129 = scmp.eq.s32.totalorder %s23, 0
      %p130 = por %p128, %p129
      %p131 = scmp.ne.s32.totalorder %s123, %s125
      %p132 = scmp.eq.s32.totalorder %s28, 1
      %p133 = por %p131, %p132
      %p134 = scmp.ne.s32.totalorder %s125, %s126
      %p135 = scmp.eq.s32.totalorder %s28, 0
      %p136 = por %p134, %p135
      %p137 = scmp.ne.s32.totalorder %s125, %s126
      %p138 = scmp.eq.s32.totalorder %s29, 1
      %p139 = por %p137, %p138
      %p141 = scmp.ne.s32.totalorder %s126, %s140
      %p142 = scmp.eq.s32.totalorder %s29, 0
      %p143 = por %p141, %p142
      %s145 = sadd.s32 %s144, 1
      %p148 = scmp.eq.s32.totalorder %s23, 1
      %p149 = scmp.ne.s32.totalorder %s144, %s146
      %p150 = scmp.eq.s32.totalorder %s23, 0
      %p151 = por %p149, %p150
      %p152 = scmp.ne.s32.totalorder %s144, %s146
      %p153 = scmp.eq.s32.totalorder %s28, 1
      %p154 = por %p152, %p153
      %p155 = scmp.ne.s32.totalorder %s146, %s147
      %p156 = scmp.eq.s32.totalorder %s28, 0
      %p157 = por %p155, %p156
      %p158 = scmp.ne.s32.totalorder %s146, %s147
      %p159 = scmp.eq.s32.totalorder %s29, 1
      %p160 = por %p158, %p159
      %p162 = scmp.ne.s32.totalorder %s147, %s161
      %p163 = scmp.eq.s32.totalorder %s29, 0
      %p164 = por %p162, %p163
      %s165 = ssub.s32 %s30, %s42
      %s166 = ssub.s32 %s31, %s38
      %s167 = sor.u32 %s165, %s166
      %p168 = scmp.eq.s32.totalorder %s167, 0
      %s170 = sadd.s32 %s169, 1
      %s171 = scalar_select %p168, %s169, %s170
      %p174 = pneg %p168
      %p175 = scmp.eq.s32.totalorder %s23, 1
      %p176 = por %p174, %p175
      %p177 = scmp.ne.s32.totalorder %s169, %s172
      %p178 = scmp.eq.s32.totalorder %s23, 0
      %p179 = por %p177, %p178
      %p180 = scmp.ne.s32.totalorder %s169, %s172
      %p181 = scmp.eq.s32.totalorder %s28, 1
      %p182 = por %p180, %p181
      %p183 = scmp.ne.s32.totalorder %s172, %s173
      %p184 = scmp.eq.s32.totalorder %s28, 0
      %p185 = por %p183, %p184
      %p186 = scmp.ne.s32.totalorder %s172, %s173
      %p187 = scmp.eq.s32.totalorder %s29, 1
      %p188 = por %p186, %p187
      %p190 = scmp.ne.s32.totalorder %s173, %s189
      %p191 = scmp.eq.s32.totalorder %s29, 0
      %p192 = por %p190, %p191
      %s193 = ssub.s32 %s30, %s42
      %p194 = scmp.eq.s32.totalorder %s193, 0
      %s196 = sadd.s32 %s195, 1
      %s197 = scalar_select %p194, %s195, %s196
      %p200 = pneg %p194
      %p201 = scmp.eq.s32.totalorder %s23, 1
      %p202 = por %p200, %p201
      %p203 = scmp.ne.s32.totalorder %s195, %s198
      %p204 = scmp.eq.s32.totalorder %s23, 0
      %p205 = por %p203, %p204
      %p206 = scmp.ne.s32.totalorder %s195, %s198
      %p207 = scmp.eq.s32.totalorder %s28, 1
      %p208 = por %p206, %p207
      %p209 = scmp.ne.s32.totalorder %s198, %s199
      %p210 = scmp.eq.s32.totalorder %s28, 0
      %p211 = por %p209, %p210
      %p212 = scmp.ne.s32.totalorder %s198, %s199
      %p213 = scmp.eq.s32.totalorder %s29, 1
      %p214 = por %p212, %p213
      %p216 = scmp.ne.s32.totalorder %s199, %s215
      %p217 = scmp.eq.s32.totalorder %s29, 0
      %p218 = por %p216, %p217
      %s219 = ssub.s32 %s30, %s42
      %p220 = scmp.eq.s32.totalorder %s219, 0
      %s222 = sadd.s32 %s221, 1
      %s223 = scalar_select %p220, %s221, %s222
      %p226 = pneg %p220
      %p227 = scmp.eq.s32.totalorder %s23, 1
      %p228 = por %p226, %p227
      %p229 = scmp.ne.s32.totalorder %s221, %s224
      %p230 = scmp.eq.s32.totalorder %s23, 0
      %p231 = por %p229, %p230
      %p232 = scmp.ne.s32.totalorder %s221, %s224
      %p233 = scmp.eq.s32.totalorder %s28, 1
      %p234 = por %p232, %p233
      %p235 = scmp.ne.s32.totalorder %s224, %s225
      %p236 = scmp.eq.s32.totalorder %s28, 0
      %p237 = por %p235, %p236
      %p238 = scmp.ne.s32.totalorder %s224, %s225
      %p239 = scmp.eq.s32.totalorder %s29, 1
      %p240 = por %p238, %p239
      %p242 = scmp.ne.s32.totalorder %s225, %s241
      %p243 = scmp.eq.s32.totalorder %s29, 0
      %p244 = por %p242, %p243
      %p245 = scmp.le.s32.totalorder 1, %s23
      %p246 = scmp.lt.s32.totalorder %s23, 3
      %p247 = pnand %p245, %p246
      %p248 = pneg %p247
      // Predicated region
      $region9: #{tpu_custom_call.1} parent=5 // pred_check
        _
      $region10: #{tpu_custom_call.1} parent=5 // pred_check_branch
        %250 = sbr.rel (%p247) target = $region12
      $region11: #{tpu_custom_call.1} parent=5 // pred_region
        %s251 = ssub.s32 %s23, 1
        // Predicated region
        $region13: #{tpu_custom_call.1} parent=11 // pred_check
          %p252 = pneg %p136
        $region14: #{tpu_custom_call.1} parent=11 // pred_check_branch
          %254 = sbr.rel (%p252) target = $region16
        $region15: #{tpu_custom_call.1} parent=11 // pred_region
          _
        $region16: #{tpu_custom_call.1} parent=11 // pred_fallthru
          _
        // Predicated region
        $region17: #{tpu_custom_call.1} parent=11 // pred_check
          %p255 = pneg %p157
        $region18: #{tpu_custom_call.1} parent=11 // pred_check_branch
          %257 = sbr.rel (%p255) target = $region20
        $region19: #{tpu_custom_call.1} parent=11 // pred_region
          _
        $region20: #{tpu_custom_call.1} parent=11 // pred_fallthru
          _
      $region12: #{tpu_custom_call.1} parent=5 // pred_fallthru
        _
      %p258 = scmp.lt.s32.totalorder %s23, 2
      // Predicated region
      $region21: #{tpu_custom_call.1} parent=5 // pred_check
        %p259 = pneg %p258
      $region22: #{tpu_custom_call.1} parent=5 // pred_check_branch
        %261 = sbr.rel (%p259) target = $region24
      $region23: #{tpu_custom_call.1} parent=5 // pred_region
        // Predicated region
        $region25: #{tpu_custom_call.1} parent=23 // pred_check
          %p262 = pneg %p57
        $region26: #{tpu_custom_call.1} parent=23 // pred_check_branch
          %264 = sbr.rel (%p262) target = $region28
        $region27: #{tpu_custom_call.1} parent=23 // pred_region
          %s265 = sand.u32 %s47, 1
          %s266 = scalar_lea.sflag [#allocation3], %s265
          %s267 = sand.u32 %s47, 1
          %s268 = smul.addr %s267, 16
          %s269 = scalar_lea.vmem [#allocation2], %s268
          %271 = vsyncadd %s266, 0
          %s272 = smul.addr %s30, 2
          %s273 = sadd.s32 %s31, %s272
          %s274 = smul.addr %s273, 8
          %s275 = scalar_lea.hbm %s0, %s274
          %s276 = sshll.u32 %s275, 4
          %s277 = int_to_ptr.hbm [resolvable:$true] %s276
          %s278 = sshll.u32 %s269, 4
          %s279 = int_to_ptr.vmem [resolvable:$true] %s278
          %284 = dma.hbm_to_vmem [thread:$0]  %s277, 256, %s279, %s266, 128, 128, 8
        $region28: #{tpu_custom_call.1} parent=23 // pred_fallthru
          _
        // Predicated region
        $region29: #{tpu_custom_call.1} parent=23 // pred_check
          %p285 = pneg %p83
        $region30: #{tpu_custom_call.1} parent=23 // pred_check_branch
          %287 = sbr.rel (%p285) target = $region32
        $region31: #{tpu_custom_call.1} parent=23 // pred_region
          %p288 = scmp.lt.s32.totalorder %s30, 1
          %s289 = scalar_select %p288, %s30, 1
          %s290 = scalar_lea.vmem %s1, %s289
        $region32: #{tpu_custom_call.1} parent=23 // pred_fallthru
          _
        // Predicated region
        $region33: #{tpu_custom_call.1} parent=23 // pred_check
          %p291 = pneg %p109
        $region34: #{tpu_custom_call.1} parent=23 // pred_check_branch
          %293 = sbr.rel (%p291) target = $region36
        $region35: #{tpu_custom_call.1} parent=23 // pred_region
          %p294 = scmp.lt.s32.totalorder %s30, 1
          %s295 = scalar_select %p294, %s30, 1
          %s296 = scalar_lea.vmem %s2, %s295
        $region36: #{tpu_custom_call.1} parent=23 // pred_fallthru
          _
      $region24: #{tpu_custom_call.1} parent=5 // pred_fallthru
        _
      %p297 = scmp.le.s32.totalorder 1, %s23
      %p298 = scmp.lt.s32.totalorder %s23, 3
      %p299 = pnand %p297, %p298
      %p300 = pneg %p299
      // Predicated region
      $region37: #{tpu_custom_call.1} parent=5 // pred_check
        _
      $region38: #{tpu_custom_call.1} parent=5 // pred_check_branch
        %302 = sbr.rel (%p299) target = $region40
      $region39: #{tpu_custom_call.1} parent=5 // pred_region
        %s303 = ssub.s32 %s23, 1
        %s304 = sand.u32 %s50, 1
        %s305 = scalar_lea.sflag [#allocation3], %s304
        %s306 = sand.u32 %s50, 1
        %s307 = smul.addr %s306, 16
        %s308 = scalar_lea.vmem [#allocation2], %s307
        // Predicated region
        $region41: #{tpu_custom_call.1} parent=39 // pred_check
          %p309 = pneg %p63
        $region42: #{tpu_custom_call.1} parent=39 // pred_check_branch
          %311 = sbr.rel (%p309) target = $region44
        $region43: #{tpu_custom_call.1} parent=39 // pred_region
          %313 = dma.done %s305, 256
        $region44: #{tpu_custom_call.1} parent=39 // pred_fallthru
          _
        %s314 = sand.u32 %s50, 1
        %s315 = scalar_lea.sflag [#allocation3], %s314
        %s316 = sand.u32 %s50, 1
        %s317 = smul.addr %s316, 16
        %s318 = scalar_lea.vmem [#allocation2], %s317
        %p319 = pneg %p63
        %p320 = pneg %p60
        %p321 = scmp.lt.s32.totalorder %s32, 1
        %s322 = scalar_select %p321, %s32, 1
        %s323 = scalar_lea.vmem %s1, %s322
        %p324 = pneg %p89
        %p325 = pneg %p86
        %p326 = scmp.lt.s32.totalorder %s32, 1
        %s327 = scalar_select %p326, %s32, 1
        %s328 = scalar_lea.vmem %s2, %s327
        %p329 = pneg %p115
        %p330 = pneg %p112
        %p331 = pneg %p136
        %p332 = pneg %p133
        %p333 = pneg %p157
        %p334 = pneg %p154
        %p335 = pneg %p185
        %p336 = pneg %p182
        %s337 = smul.u32 8, %s33
        %p338 = scmp.lt.s32.totalorder %s32, 1
        %s339 = scalar_select %p338, %s32, 1
        %p340 = scmp.lt.s32.totalorder %s337, 7
        %s341 = scalar_select %p340, %s337, 7
        %s342 = smul.addr %s339, 8
        %s343 = sadd.s32 %s341, %s342
        %s344 = smul.addr %s343, 4
        %s345 = scalar_lea.vmem %s5, %s344
        %p346 = pneg %p211
        %p347 = pneg %p208
        %s348 = sand.u32 %s198, 1
        %s349 = scalar_lea.sflag [#allocation4], %s348
        %s350 = sand.u32 %s198, 1
        %s351 = scalar_lea.vmem [#allocation5], %s350
        %p352 = pneg %p237
        %p353 = pneg %p234
        %s354 = sand.u32 %s224, 1
        %s355 = scalar_lea.sflag [#allocation7], %s354
        %s356 = sand.u32 %s224, 1
        %s357 = scalar_lea.vmem [#allocation6], %s356
        %p358 = scmp.lt.s32.totalorder %s32, 1
        %s359 = scalar_select %p358, %s32, 1
        %s360 = scalar_lea.vmem %s1, %s359
        %p361 = scmp.lt.s32.totalorder %s32, 1
        %s362 = scalar_select %p361, %s32, 1
        %s363 = scalar_lea.vmem %s2, %s362
        %s364 = smul.u32 8, %s33
        %p365 = scmp.lt.s32.totalorder %s32, 1
        %s366 = scalar_select %p365, %s32, 1
        %p367 = scmp.lt.s32.totalorder %s364, 7
        %s368 = scalar_select %p367, %s364, 7
        %s369 = smul.addr %s366, 8
        %s370 = sadd.s32 %s368, %s369
        %s371 = smul.addr %s370, 4
        %s372 = scalar_lea.vmem %s5, %s371
        %s373 = smul.u32 8, %s33
        %v375 = vld [vmem:[%s308] sm:$0xff]
        %v376 = vld [vmem:[%s308 + $0x8] sm:$0xff]
        %377 = vxpose.xlu0.b32.start [1/16] %v375, 128
        %378 = vxpose.xlu0.b32.cont [2/16] %v376, 128
        %379 = vxpose.xlu0.b32.cont [3/16] 0.0, 128
        %380 = vxpose.xlu0.b32.cont [4/16] 0.0, 128
        %381 = vxpose.xlu0.b32.cont [5/16] 0.0, 128
        %382 = vxpose.xlu0.b32.cont [6/16] 0.0, 128
        %383 = vxpose.xlu0.b32.cont [7/16] 0.0, 128
        %384 = vxpose.xlu0.b32.cont [8/16] 0.0, 128
        %385 = vxpose.xlu0.b32.cont [9/16] 0.0, 128
        %386 = vxpose.xlu0.b32.cont [10/16] 0.0, 128
        %387 = vxpose.xlu0.b32.cont [11/16] 0.0, 128
        %388 = vxpose.xlu0.b32.cont [12/16] 0.0, 128
        %389 = vxpose.xlu0.b32.cont [13/16] 0.0, 128
        %390 = vxpose.xlu0.b32.cont [14/16] 0.0, 128
        %391 = vxpose.xlu0.b32.cont [15/16] 0.0, 128
        %392 = vxpose.xlu0.b32.end [16/16] 0.0, 128
        %v393 = vpop.trf.xlu0
        %v394 = vpop.trf.xlu0
        %v395 = vpop.trf.xlu0
        %v396 = vpop.trf.xlu0
        %v397 = vpop.trf.xlu0
        %v398 = vpop.trf.xlu0
        %v399 = vpop.trf.xlu0
        %v400 = vpop.trf.xlu0
        %v401 = vpop.trf.xlu0
        %v402 = vpop.trf.xlu0
        %v403 = vpop.trf.xlu0
        %v404 = vpop.trf.xlu0
        %v405 = vpop.trf.xlu0
        %v406 = vpop.trf.xlu0
        %v407 = vpop.trf.xlu0
        %v408 = vpop.trf.xlu0
        %v409 = vld [vmem:[%s360] sm:$0x1]
        %v411 = vperm.slane %v409, 0
        %v413 = vmul.f32 %v393, %v411
        %v414 = vmul.f32 %v394, %v411
        %v415 = vmul.f32 %v395, %v411
        %v416 = vmul.f32 %v396, %v411
        %v417 = vmul.f32 %v397, %v411
        %v418 = vmul.f32 %v398, %v411
        %v419 = vmul.f32 %v399, %v411
        %v420 = vmul.f32 %v400, %v411
        %v421 = vld [vmem:[%s363] sm:$0x1]
        %v423 = vperm.slane %v421, 0
        %v425 = vadd.f32 %v413, %v423
        %v426 = vadd.f32 %v414, %v423
        %v427 = vadd.f32 %v415, %v423
        %v428 = vadd.f32 %v416, %v423
        %v429 = vadd.f32 %v417, %v423
        %v430 = vadd.f32 %v418, %v423
        %v431 = vadd.f32 %v419, %v423
        %v432 = vadd.f32 %v420, %v423
        %v433 = vmax.f32 %v425, 0.0
        %v434 = vmax.f32 %v426, 0.0
        %v435 = vmax.f32 %v427, 0.0
        %v436 = vmax.f32 %v428, 0.0
        %v437 = vmax.f32 %v429, 0.0
        %v438 = vmax.f32 %v430, 0.0
        %v439 = vmax.f32 %v431, 0.0
        %v440 = vmax.f32 %v432, 0.0
        %v441 = vpack.c.bf16 %v434, %v433
        %v442 = vpack.c.bf16 %v436, %v435
        %v443 = vpack.c.bf16 %v438, %v437
        %v444 = vpack.c.bf16 %v440, %v439
        %v445 = vld [vmem:[%s3] sm:$0xf]
        %v446 = vld [vmem:[%s3 + $0x4] sm:$0xf]
        %v447 = vld [vmem:[%s4] sm:$0x1]
        %v449 = vperm.slane %v447, 0
        %v453 = vunpack.c.l.b16 %v445
        %v454 = vunpack.c.l.b16 %v446
        %v455 = vpack.c.b16 %v454, %v453
        %vm457 = vcmask 130048
        %v459 = vsel %vm457, %v441, 0
        %v462 = vsel %vm457, %v442, 0
        %v465 = vsel %vm457, %v443, 0
        %v468 = vsel %vm457, %v444, 0
        %470 = vmatpush.bf16.msra.mxu0 0
        %471 = vmatpush.bf16.msra.mxu0 0
        %472 = vmatpush.bf16.msra.mxu0 0
        %473 = vmatpush.bf16.msra.mxu0 0
        %474 = vmatpush.bf16.msra.mxu0 0
        %475 = vmatpush.bf16.msra.mxu0 0
        %476 = vmatpush.bf16.msra.mxu0 0
        %477 = vmatpush.bf16.msra.mxu0 %v455
        %478 = vmatmul.bf16.gmra.mxu0 %v459
        %v479 = vpop.f32.mrf.mxu0
        %v480 = vadd.f32 %v449, %v479
        %v481 = vpop.f32.mrf.mxu0
        %v482 = vadd.f32 %v449, %v481
        %483 = vmatmul.bf16.gmra.mxu0 %v462
        %v484 = vpop.f32.mrf.mxu0
        %v485 = vadd.f32 %v449, %v484
        %v486 = vpop.f32.mrf.mxu0
        %v487 = vadd.f32 %v449, %v486
        %488 = vmatmul.bf16.gmra.mxu0 %v465
        %v489 = vpop.f32.mrf.mxu0
        %v490 = vadd.f32 %v449, %v489
        %v491 = vpop.f32.mrf.mxu0
        %v492 = vadd.f32 %v449, %v491
        %493 = vmatmul.bf16.gmra.mxu0 %v468
        %v494 = vpop.f32.mrf.mxu0
        %v495 = vadd.f32 %v449, %v494
        %v496 = vpop.f32.mrf.mxu0
        %v497 = vadd.f32 %v449, %v496
        %498 = vdwg.mxu0
        %p499 = scmp.eq.s32.totalorder %s33, 0
        // Predicated region
        $region45: #{tpu_custom_call.1} parent=39 // pred_check
          %p500 = pneg %p499
        $region46: #{tpu_custom_call.1} parent=39 // pred_check_branch
          %502 = sbr.rel (%p500) target = $region48
        $region47: #{tpu_custom_call.1} parent=39 // pred_region
          %vm503 = vcmask 24576
          %504 = vst.msk [vmem:[%s351] sm:$0x1] %vm503, 0.0
          %505 = vst.msk [vmem:[%s357] sm:$0x1] %vm503, 0.0
        $region48: #{tpu_custom_call.1} parent=39 // pred_fallthru
          _
        %v506 = vld [vmem:[%s351] sm:$0x1]
        %vm507 = vcmask 31744
        %v508 = vsel %vm507, %v480, 0.0
        %v509 = vsel %vm507, %v482, 0.0
        %v510 = vadd.f32 %v508, %v509
        %v511 = vsel %vm507, %v485, 0.0
        %v512 = vadd.f32 %v510, %v511
        %v513 = vsel %vm507, %v487, 0.0
        %v514 = vadd.f32 %v512, %v513
        %v515 = vsel %vm507, %v490, 0.0
        %v516 = vadd.f32 %v514, %v515
        %v517 = vsel %vm507, %v492, 0.0
        %v518 = vadd.f32 %v516, %v517
        %v519 = vsel %vm507, %v495, 0.0
        %v520 = vadd.f32 %v518, %v519
        %v521 = vsel %vm507, %v497, 0.0
        %v522 = vadd.f32 %v520, %v521
        %v523 = vrot.slane %v522, 4
        %v524 = vadd.f32 %v522, %v523
        %v525 = vrot.slane %v524, 2
        %v526 = vadd.f32 %v524, %v525
        %v527 = vrot.slane %v526, 1
        %v528 = vadd.f32 %v526, %v527
        %v529 = vadd.f32 %v506, %v528
        %vm530 = vcmask 24576
        %531 = vst.msk [vmem:[%s351] sm:$0x1] %vm530, %v529
        %v532 = vld [vmem:[%s357] sm:$0x1]
        %v533 = vmul.f32 %v480, %v480
        %v534 = vmul.f32 %v482, %v482
        %v535 = vmul.f32 %v485, %v485
        %v536 = vmul.f32 %v487, %v487
        %v537 = vmul.f32 %v490, %v490
        %v538 = vmul.f32 %v492, %v492
        %v539 = vmul.f32 %v495, %v495
        %v540 = vmul.f32 %v497, %v497
        %v541 = vsel %vm507, %v533, 0.0
        %v542 = vsel %vm507, %v534, 0.0
        %v543 = vadd.f32 %v541, %v542
        %v544 = vsel %vm507, %v535, 0.0
        %v545 = vadd.f32 %v543, %v544
        %v546 = vsel %vm507, %v536, 0.0
        %v547 = vadd.f32 %v545, %v546
        %v548 = vsel %vm507, %v537, 0.0
        %v549 = vadd.f32 %v547, %v548
        %v550 = vsel %vm507, %v538, 0.0
        %v551 = vadd.f32 %v549, %v550
        %v552 = vsel %vm507, %v539, 0.0
        %v553 = vadd.f32 %v551, %v552
        %v554 = vsel %vm507, %v540, 0.0
        %v555 = vadd.f32 %v553, %v554
        %v556 = vrot.slane %v555, 4
        %v557 = vadd.f32 %v555, %v556
        %v558 = vrot.slane %v557, 2
        %v559 = vadd.f32 %v557, %v558
        %v560 = vrot.slane %v559, 1
        %v561 = vadd.f32 %v559, %v560
        %v562 = vadd.f32 %v532, %v561
        %563 = vst.msk [vmem:[%s357] sm:$0x1] %vm530, %v562
        %v564 = vpack.c.bf16 %v480, %v480
        %v565 = vpack.c.bf16 %v482, %v482
        %v566 = vpack.c.bf16 %v485, %v485
        %v567 = vpack.c.bf16 %v487, %v487
        %v568 = vpack.c.bf16 %v490, %v490
        %v569 = vpack.c.bf16 %v492, %v492
        %v570 = vpack.c.bf16 %v495, %v495
        %v571 = vpack.c.bf16 %v497, %v497
        %vm572 = vcmask 27648
        %573 = vst.msk [vmem:[%s372] sm:$0xf] %vm572, %v564
        %574 = vst.msk [vmem:[%s372 + $0x4] sm:$0xf] %vm572, %v565
        %575 = vst.msk [vmem:[%s372 + $0x8] sm:$0xf] %vm572, %v566
        %576 = vst.msk [vmem:[%s372 + $0xc] sm:$0xf] %vm572, %v567
        %577 = vst.msk [vmem:[%s372 + $0x10] sm:$0xf] %vm572, %v568
        %578 = vst.msk [vmem:[%s372 + $0x14] sm:$0xf] %vm572, %v569
        %579 = vst.msk [vmem:[%s372 + $0x18] sm:$0xf] %vm572, %v570
        %580 = vst.msk [vmem:[%s372 + $0x1c] sm:$0xf] %vm572, %v571
        %s581 = smul.u32 8, %s33
        %p582 = scmp.lt.s32.totalorder %s32, 1
        %s583 = scalar_select %p582, %s32, 1
        %p584 = scmp.lt.s32.totalorder %s581, 7
        %s585 = scalar_select %p584, %s581, 7
        %s586 = smul.addr %s583, 8
        %s587 = sadd.s32 %s585, %s586
        %s588 = smul.addr %s587, 4
        %s589 = scalar_lea.vmem %s5, %s588
        %s590 = sand.u32 %s198, 1
        %s591 = scalar_lea.sflag [#allocation4], %s590
        %s592 = sand.u32 %s198, 1
        %s593 = scalar_lea.vmem [#allocation5], %s592
        %s594 = sand.u32 %s224, 1
        %s595 = scalar_lea.sflag [#allocation7], %s594
        %s596 = sand.u32 %s224, 1
        %s597 = scalar_lea.vmem [#allocation6], %s596
        // Predicated region
        $region49: #{tpu_custom_call.1} parent=39 // pred_check
          %p598 = pneg %p182
        $region50: #{tpu_custom_call.1} parent=39 // pred_check_branch
          %600 = sbr.rel (%p598) target = $region52
        $region51: #{tpu_custom_call.1} parent=39 // pred_region
          %s601 = smul.u32 8, %s33
        $region52: #{tpu_custom_call.1} parent=39 // pred_fallthru
          _
        // Predicated region
        $region53: #{tpu_custom_call.1} parent=39 // pred_check
          %p602 = pneg %p208
        $region54: #{tpu_custom_call.1} parent=39 // pred_check_branch
          %604 = sbr.rel (%p602) target = $region56
        $region55: #{tpu_custom_call.1} parent=39 // pred_region
          %606 = vsyncadd %s591, 0
          %s607 = scalar_lea.hbm %s6, %s32
          %s609 = sshll.u32 %s593, 4
          %s610 = int_to_ptr.vmem [resolvable:$true] %s609
          %s611 = sshll.u32 %s607, 4
          %s612 = int_to_ptr.hbm [resolvable:$true] %s611
          %614 = dma.vmem_to_hbm [thread:$0]  %s610, 16, %s612, %s591
        $region56: #{tpu_custom_call.1} parent=39 // pred_fallthru
          _
        // Predicated region
        $region57: #{tpu_custom_call.1} parent=39 // pred_check
          %p615 = pneg %p234
        $region58: #{tpu_custom_call.1} parent=39 // pred_check_branch
          %617 = sbr.rel (%p615) target = $region60
        $region59: #{tpu_custom_call.1} parent=39 // pred_region
          %619 = vsyncadd %s595, 0
          %s620 = scalar_lea.hbm %s7, %s32
          %s622 = sshll.u32 %s597, 4
          %s623 = int_to_ptr.vmem [resolvable:$true] %s622
          %s624 = sshll.u32 %s620, 4
          %s625 = int_to_ptr.hbm [resolvable:$true] %s624
          %627 = dma.vmem_to_hbm [thread:$0]  %s623, 16, %s625, %s595
        $region60: #{tpu_custom_call.1} parent=39 // pred_fallthru
          _
      $region40: #{tpu_custom_call.1} parent=5 // pred_fallthru
        _
      %p628 = scmp.le.s32.totalorder 2, %s23
      // Predicated region
      $region61: #{tpu_custom_call.1} parent=5 // pred_check
        %p629 = pneg %p628
      $region62: #{tpu_custom_call.1} parent=5 // pred_check_branch
        %631 = sbr.rel (%p629) target = $region64
      $region63: #{tpu_custom_call.1} parent=5 // pred_region
        %s632 = ssub.s32 %s23, 2
        // Predicated region
        $region65: #{tpu_custom_call.1} parent=63 // pred_check
          %p633 = pneg %p188
        $region66: #{tpu_custom_call.1} parent=63 // pred_check_branch
          %635 = sbr.rel (%p633) target = $region68
        $region67: #{tpu_custom_call.1} parent=63 // pred_region
          %s636 = smul.u32 8, %s35
          %p637 = scmp.lt.s32.totalorder %s34, 1
          %s638 = scalar_select %p637, %s34, 1
          %p639 = scmp.lt.s32.totalorder %s636, 7
          %s640 = scalar_select %p639, %s636, 7
          %s641 = smul.addr %s638, 8
          %s642 = sadd.s32 %s640, %s641
          %s643 = smul.addr %s642, 4
          %s644 = scalar_lea.vmem %s5, %s643
        $region68: #{tpu_custom_call.1} parent=63 // pred_fallthru
          _
        // Predicated region
        $region69: #{tpu_custom_call.1} parent=63 // pred_check
          %p645 = pneg %p214
        $region70: #{tpu_custom_call.1} parent=63 // pred_check_branch
          %647 = sbr.rel (%p645) target = $region72
        $region71: #{tpu_custom_call.1} parent=63 // pred_region
          %s648 = sand.u32 %s199, 1
          %s649 = scalar_lea.sflag [#allocation4], %s648
          %s650 = sand.u32 %s199, 1
          %s651 = scalar_lea.vmem [#allocation5], %s650
          %653 = dma.done %s649, 16
        $region72: #{tpu_custom_call.1} parent=63 // pred_fallthru
          _
        // Predicated region
        $region73: #{tpu_custom_call.1} parent=63 // pred_check
          %p654 = pneg %p240
        $region74: #{tpu_custom_call.1} parent=63 // pred_check_branch
          %656 = sbr.rel (%p654) target = $region76
        $region75: #{tpu_custom_call.1} parent=63 // pred_region
          %s657 = sand.u32 %s225, 1
          %s658 = scalar_lea.sflag [#allocation7], %s657
          %s659 = sand.u32 %s225, 1
          %s660 = scalar_lea.vmem [#allocation6], %s659
          %662 = dma.done %s658, 16
        $region76: #{tpu_custom_call.1} parent=63 // pred_fallthru
          _
      $region64: #{tpu_custom_call.1} parent=5 // pred_fallthru
        _
    $region6: #{tpu_custom_call.1} parent=1 // loop_footer
      %s27 = sadd.s32 1, %s23
    $region7: #{tpu_custom_call.1} parent=1 // loop_footer_branch
      %22 = sbr.rel target = $region3
    $region8: #{tpu_custom_call.1} parent=1 // loop_exit
      _
    %663 = vsyncpa [#allocation3], 1
    %s664 = scalar_lea.sflag [#allocation3], 1
    %665 = vsyncpa %s664, 1
    %666 = vsyncpa [#allocation4], 1
    %s667 = scalar_lea.sflag [#allocation4], 1
    %668 = vsyncpa %s667, 1
    %669 = vsyncpa [#allocation7], 1
    %s670 = scalar_lea.sflag [#allocation7], 1
    %671 = vsyncpa %s670, 1

</llo_original>
